<compile_context>
chip_gen: v7x
topology: tpu7x:2x2x1
jax: 0.10.0
libtpu: 0.0.40
codegen_flags: <defaults>
</compile_context>

<pallas_src>
import functools

import jax
import jax.numpy as jnp
from jax import lax
from jax.experimental import pallas as pl
from jax.experimental.pallas import tpu as pltpu

ENCODER_REGULAR_VTH = 0.999


def _spiking_encoder_kernel(spike_ts, obs_ref, mean_ref, std_ref, out_ref):
    """obs_ref: (b_tile, n)   mean_ref/std_ref: (1, n)
    out_ref: (spike_ts, b_tile, n) — lane-dense per-step planes."""
    obs = obs_ref[...]                               # (b_tile, n)
    mean = mean_ref[...]                             # (1, n)
    std = std_ref[...]                               # (1, n)

    diff = obs - mean                                # (b_tile, n)
    # Same association as the reference:  (-0.5 * d^2) / std^2
    pop_act = jnp.exp(-0.5 * (diff * diff) / (std * std))

    volt0 = jnp.zeros_like(pop_act)

    def body(step, volt):
        volt = volt + pop_act
        spike = (volt > ENCODER_REGULAR_VTH).astype(jnp.float32)
        out_ref[step] = spike.astype(out_ref.dtype)  # full (b_tile, n) dense store
        return volt - spike * ENCODER_REGULAR_VTH

    lax.fori_loop(0, spike_ts, body, volt0, unroll=min(int(spike_ts), 8))


def _choose_b_tile(B, spike_ts, n, out_itemsize):
    """Pick a batch tile so the double-buffered output block fits comfortably in
    VMEM on every chip (v7x has only 64 MiB / 32 MiB scoped default)."""
    budget = 16 * 1024 * 1024
    per_row = 2 * spike_ts * n * out_itemsize + 2 * n * 4  # out + obs, double-buffered
    max_rows = max(1, budget // max(per_row, 1))
    if B <= max_rows:
        return B                          # full batch → single-block sublane dim OK
    return max(8, (max_rows // 8) * 8)    # sublane-aligned tile; ragged tail handled


def spiking_encoder_regular_spike(obs, mean, std, spike_ts, out_dtype=jnp.float32):
    """obs: (B, obs_dim) f32; mean/std: (obs_dim, pop_dim) f32.
    Returns pop_spikes: (B, obs_dim*pop_dim, spike_ts) in out_dtype (PyTorch layout)."""
    B, obs_dim = obs.shape
    _, pop_dim = mean.shape
    n = obs_dim * pop_dim

    # Lane-dense flattening of the tiny inputs (layout plumbing, not compute):
    obs_flat = jnp.repeat(obs.astype(jnp.float32), pop_dim, axis=1)   # (B, n)
    mean_flat = mean.astype(jnp.float32).reshape(1, n)                # (1, n)
    std_flat = std.astype(jnp.float32).reshape(1, n)                  # (1, n)

    b_tile = _choose_b_tile(B, spike_ts, n, jnp.dtype(out_dtype).itemsize)
    grid = (pl.cdiv(B, b_tile),)

    kernel = functools.partial(_spiking_encoder_kernel, spike_ts)

    out = pl.pallas_call(
        kernel,
        out_shape=jax.ShapeDtypeStruct((spike_ts, B, n), out_dtype),
        grid=grid,
        in_specs=[
            pl.BlockSpec((b_tile, n), lambda i: (i, 0)),
            pl.BlockSpec((1, n), lambda i: (0, 0)),
            pl.BlockSpec((1, n), lambda i: (0, 0)),
        ],
        out_specs=pl.BlockSpec((spike_ts, b_tile, n), lambda i: (0, i, 0)),
        compiler_params=pltpu.CompilerParams(
            dimension_semantics=("parallel",),
            vmem_limit_bytes=32 * 1024 * 1024,
        ),
    )(obs_flat, mean_flat, std_flat)

    # (spike_ts, B, n) -> (B, n, spike_ts)  (PyTorch convention).
    # TODO(synk): if the downstream SNN can consume (spike_ts, B, n) directly, return
    #             `out` as-is and skip this extra HBM pass.
    return jnp.transpose(out, (1, 2, 0))


def _reference(obs, mean, std, spike_ts):
    """Pure-JAX reference mirroring the PyTorch forward."""
    B, obs_dim = obs.shape
    pop_dim = mean.shape[-1]
    n = obs_dim * pop_dim
    pop_act = jnp.exp(
        -0.5 * (obs[:, :, None] - mean[None]) ** 2 / std[None] ** 2
    ).reshape(B, n)
    volt = jnp.zeros((B, n), jnp.float32)
    spikes = []
    for _ in range(spike_ts):
        volt = volt + pop_act
        s = (volt > ENCODER_REGULAR_VTH).astype(jnp.float32)
        spikes.append(s)
        volt = volt - s * ENCODER_REGULAR_VTH
    return jnp.stack(spikes, axis=-1)


if __name__ == "__main__":
    # Module hyperparameters (deterministic, built in-script)
    obs_dim = 4
    pop_dim = 10
    spike_ts = 8
    mean_range = (-3.0, 3.0)
    std_val = 1.5
    batch_size = 2

    # Parameters exactly as in __init__
    delta_mean = (mean_range[1] - mean_range[0]) / (pop_dim - 1)
    mean = jnp.broadcast_to(
        mean_range[0] + delta_mean * jnp.arange(pop_dim, dtype=jnp.float32),
        (obs_dim, pop_dim),
    ).astype(jnp.float32)
    std = jnp.full((obs_dim, pop_dim), std_val, dtype=jnp.float32)

    # Deterministic input observation
    key = jax.random.PRNGKey(0)
    obs = jax.random.normal(key, (batch_size, obs_dim), dtype=jnp.float32) * 2.0

    pop_spikes = spiking_encoder_regular_spike(obs, mean, std, spike_ts)
    pop_spikes = jax.block_until_ready(pop_spikes)

    assert pop_spikes.shape == (batch_size, obs_dim * pop_dim, spike_ts)
    ref = _reference(obs, mean, std, spike_ts)
    assert jnp.allclose(pop_spikes, ref), "mismatch vs pure-JAX reference"

    print("KERNEL_OK")
</pallas_src>

<mosaic_0001>
module attributes {stable_mosaic.version = 11 : i64} {
  func.func @_spiking_encoder_kernel(%arg0: i32, %arg1: memref<2x40xf32, #tpu.memory_space<vmem>>, %arg2: memref<1x40xf32, #tpu.memory_space<vmem>>, %arg3: memref<1x40xf32, #tpu.memory_space<vmem>>, %arg4: memref<8x2x40xf32, #tpu.memory_space<vmem>>) attributes {dimension_semantics = [#tpu.dimension_semantics<parallel>], iteration_bounds = array<i64: 1>, scalar_prefetch = 0 : i64, scratch_operands = 0 : i64, tpu.core_type = #tpu.core_type<tc>, window_params = [{transform_indices = @transform_0, window_bounds = array<i64: 2, 40>}, {pipeline_mode = #tpu.pipeline_mode<synchronous>, transform_indices = @transform_1, window_bounds = array<i64: 1, 40>}, {pipeline_mode = #tpu.pipeline_mode<synchronous>, transform_indices = @transform_2, window_bounds = array<i64: 1, 40>}, {transform_indices = @transform_3, window_bounds = array<i64: 8, 2, 40>}]} {
    %c0 = arith.constant 0 : index
    %c0_0 = arith.constant 0 : index
    %0 = vector.load %arg1[%c0, %c0_0] : memref<2x40xf32, #tpu.memory_space<vmem>>, vector<2x40xf32>
    %c0_1 = arith.constant 0 : index
    %c0_2 = arith.constant 0 : index
    %1 = vector.load %arg2[%c0_1, %c0_2] : memref<1x40xf32, #tpu.memory_space<vmem>>, vector<1x40xf32>
    %c0_3 = arith.constant 0 : index
    %c0_4 = arith.constant 0 : index
    %2 = vector.load %arg3[%c0_3, %c0_4] : memref<1x40xf32, #tpu.memory_space<vmem>>, vector<1x40xf32>
    %3 = vector.broadcast %1 : vector<1x40xf32> to vector<2x40xf32>
    %4 = arith.subf %0, %3 : vector<2x40xf32>
    %5 = arith.mulf %4, %4 : vector<2x40xf32>
    %cst = arith.constant -5.000000e-01 : f32
    %6 = vector.broadcast %cst : f32 to vector<2x40xf32>
    %7 = arith.mulf %6, %5 : vector<2x40xf32>
    %8 = arith.mulf %2, %2 : vector<1x40xf32>
    %9 = vector.broadcast %8 : vector<1x40xf32> to vector<2x40xf32>
    %10 = arith.divf %7, %9 : vector<2x40xf32>
    %11 = math.exp %10 : vector<2x40xf32>
    %cst_5 = arith.constant 0.000000e+00 : f32
    %12 = vector.broadcast %cst_5 : f32 to vector<2x40xf32>
    %c0_i32 = arith.constant 0 : i32
    %13 = arith.addf %12, %11 : vector<2x40xf32>
    %cst_6 = arith.constant 9.990000e-01 : f32
    %14 = vector.broadcast %cst_6 : f32 to vector<2x40xf32>
    %15 = arith.cmpf ogt, %13, %14 : vector<2x40xf32>
    %16 = arith.extui %15 : vector<2x40xi1> to vector<2x40xi32>
    %17 = arith.sitofp %16 : vector<2x40xi32> to vector<2x40xf32>
    %18 = arith.index_cast %c0_i32 : i32 to index
    %c0_7 = arith.constant 0 : index
    %c0_8 = arith.constant 0 : index
    %19 = vector.load %arg4[%18, %c0_7, %c0_8] : memref<8x2x40xf32, #tpu.memory_space<vmem>>, vector<1x2x40xf32>
    %20 = vector.shape_cast %19 : vector<1x2x40xf32> to vector<2x40xf32>
    %21 = vector.shape_cast %17 : vector<2x40xf32> to vector<1x2x40xf32>
    tpu.vector_store %arg4[%18, %c0_7, %c0_8], %21 {strides = array<i32>} : memref<8x2x40xf32, #tpu.memory_space<vmem>>, vector<1x2x40xf32>,
    %cst_9 = arith.constant 9.990000e-01 : f32
    %22 = vector.broadcast %cst_9 : f32 to vector<2x40xf32>
    %23 = arith.mulf %17, %22 : vector<2x40xf32>
    %24 = arith.subf %13, %23 : vector<2x40xf32>
    %c1_i32 = arith.constant 1 : i32
    %25 = arith.addf %24, %11 : vector<2x40xf32>
    %cst_10 = arith.constant 9.990000e-01 : f32
    %26 = vector.broadcast %cst_10 : f32 to vector<2x40xf32>
    %27 = arith.cmpf ogt, %25, %26 : vector<2x40xf32>
    %28 = arith.extui %27 : vector<2x40xi1> to vector<2x40xi32>
    %29 = arith.sitofp %28 : vector<2x40xi32> to vector<2x40xf32>
    %30 = arith.index_cast %c1_i32 : i32 to index
    %c0_11 = arith.constant 0 : index
    %c0_12 = arith.constant 0 : index
    %31 = vector.load %arg4[%30, %c0_11, %c0_12] : memref<8x2x40xf32, #tpu.memory_space<vmem>>, vector<1x2x40xf32>
    %32 = vector.shape_cast %31 : vector<1x2x40xf32> to vector<2x40xf32>
    %33 = vector.shape_cast %29 : vector<2x40xf32> to vector<1x2x40xf32>
    tpu.vector_store %arg4[%30, %c0_11, %c0_12], %33 {strides = array<i32>} : memref<8x2x40xf32, #tpu.memory_space<vmem>>, vector<1x2x40xf32>,
    %cst_13 = arith.constant 9.990000e-01 : f32
    %34 = vector.broadcast %cst_13 : f32 to vector<2x40xf32>
    %35 = arith.mulf %29, %34 : vector<2x40xf32>
    %36 = arith.subf %25, %35 : vector<2x40xf32>
    %c2_i32 = arith.constant 2 : i32
    %37 = arith.addf %36, %11 : vector<2x40xf32>
    %cst_14 = arith.constant 9.990000e-01 : f32
    %38 = vector.broadcast %cst_14 : f32 to vector<2x40xf32>
    %39 = arith.cmpf ogt, %37, %38 : vector<2x40xf32>
    %40 = arith.extui %39 : vector<2x40xi1> to vector<2x40xi32>
    %41 = arith.sitofp %40 : vector<2x40xi32> to vector<2x40xf32>
    %42 = arith.index_cast %c2_i32 : i32 to index
    %c0_15 = arith.constant 0 : index
    %c0_16 = arith.constant 0 : index
    %43 = vector.load %arg4[%42, %c0_15, %c0_16] : memref<8x2x40xf32, #tpu.memory_space<vmem>>, vector<1x2x40xf32>
    %44 = vector.shape_cast %43 : vector<1x2x40xf32> to vector<2x40xf32>
    %45 = vector.shape_cast %41 : vector<2x40xf32> to vector<1x2x40xf32>
    tpu.vector_store %arg4[%42, %c0_15, %c0_16], %45 {strides = array<i32>} : memref<8x2x40xf32, #tpu.memory_space<vmem>>, vector<1x2x40xf32>,
    %cst_17 = arith.constant 9.990000e-01 : f32
    %46 = vector.broadcast %cst_17 : f32 to vector<2x40xf32>
    %47 = arith.mulf %41, %46 : vector<2x40xf32>
    %48 = arith.subf %37, %47 : vector<2x40xf32>
    %c3_i32 = arith.constant 3 : i32
    %49 = arith.addf %48, %11 : vector<2x40xf32>
    %cst_18 = arith.constant 9.990000e-01 : f32
    %50 = vector.broadcast %cst_18 : f32 to vector<2x40xf32>
    %51 = arith.cmpf ogt, %49, %50 : vector<2x40xf32>
    %52 = arith.extui %51 : vector<2x40xi1> to vector<2x40xi32>
    %53 = arith.sitofp %52 : vector<2x40xi32> to vector<2x40xf32>
    %54 = arith.index_cast %c3_i32 : i32 to index
    %c0_19 = arith.constant 0 : index
    %c0_20 = arith.constant 0 : index
    %55 = vector.load %arg4[%54, %c0_19, %c0_20] : memref<8x2x40xf32, #tpu.memory_space<vmem>>, vector<1x2x40xf32>
    %56 = vector.shape_cast %55 : vector<1x2x40xf32> to vector<2x40xf32>
    %57 = vector.shape_cast %53 : vector<2x40xf32> to vector<1x2x40xf32>
    tpu.vector_store %arg4[%54, %c0_19, %c0_20], %57 {strides = array<i32>} : memref<8x2x40xf32, #tpu.memory_space<vmem>>, vector<1x2x40xf32>,
    %cst_21 = arith.constant 9.990000e-01 : f32
    %58 = vector.broadcast %cst_21 : f32 to vector<2x40xf32>
    %59 = arith.mulf %53, %58 : vector<2x40xf32>
    %60 = arith.subf %49, %59 : vector<2x40xf32>
    %c4_i32 = arith.constant 4 : i32
    %61 = arith.addf %60, %11 : vector<2x40xf32>
    %cst_22 = arith.constant 9.990000e-01 : f32
    %62 = vector.broadcast %cst_22 : f32 to vector<2x40xf32>
    %63 = arith.cmpf ogt, %61, %62 : vector<2x40xf32>
    %64 = arith.extui %63 : vector<2x40xi1> to vector<2x40xi32>
    %65 = arith.sitofp %64 : vector<2x40xi32> to vector<2x40xf32>
    %66 = arith.index_cast %c4_i32 : i32 to index
    %c0_23 = arith.constant 0 : index
    %c0_24 = arith.constant 0 : index
    %67 = vector.load %arg4[%66, %c0_23, %c0_24] : memref<8x2x40xf32, #tpu.memory_space<vmem>>, vector<1x2x40xf32>
    %68 = vector.shape_cast %67 : vector<1x2x40xf32> to vector<2x40xf32>
    %69 = vector.shape_cast %65 : vector<2x40xf32> to vector<1x2x40xf32>
    tpu.vector_store %arg4[%66, %c0_23, %c0_24], %69 {strides = array<i32>} : memref<8x2x40xf32, #tpu.memory_space<vmem>>, vector<1x2x40xf32>,
    %cst_25 = arith.constant 9.990000e-01 : f32
    %70 = vector.broadcast %cst_25 : f32 to vector<2x40xf32>
    %71 = arith.mulf %65, %70 : vector<2x40xf32>
    %72 = arith.subf %61, %71 : vector<2x40xf32>
    %c5_i32 = arith.constant 5 : i32
    %73 = arith.addf %72, %11 : vector<2x40xf32>
    %cst_26 = arith.constant 9.990000e-01 : f32
    %74 = vector.broadcast %cst_26 : f32 to vector<2x40xf32>
    %75 = arith.cmpf ogt, %73, %74 : vector<2x40xf32>
    %76 = arith.extui %75 : vector<2x40xi1> to vector<2x40xi32>
    %77 = arith.sitofp %76 : vector<2x40xi32> to vector<2x40xf32>
    %78 = arith.index_cast %c5_i32 : i32 to index
    %c0_27 = arith.constant 0 : index
    %c0_28 = arith.constant 0 : index
    %79 = vector.load %arg4[%78, %c0_27, %c0_28] : memref<8x2x40xf32, #tpu.memory_space<vmem>>, vector<1x2x40xf32>
    %80 = vector.shape_cast %79 : vector<1x2x40xf32> to vector<2x40xf32>
    %81 = vector.shape_cast %77 : vector<2x40xf32> to vector<1x2x40xf32>
    tpu.vector_store %arg4[%78, %c0_27, %c0_28], %81 {strides = array<i32>} : memref<8x2x40xf32, #tpu.memory_space<vmem>>, vector<1x2x40xf32>,
    %cst_29 = arith.constant 9.990000e-01 : f32
    %82 = vector.broadcast %cst_29 : f32 to vector<2x40xf32>
    %83 = arith.mulf %77, %82 : vector<2x40xf32>
    %84 = arith.subf %73, %83 : vector<2x40xf32>
    %c6_i32 = arith.constant 6 : i32
    %85 = arith.addf %84, %11 : vector<2x40xf32>
    %cst_30 = arith.constant 9.990000e-01 : f32
    %86 = vector.broadcast %cst_30 : f32 to vector<2x40xf32>
    %87 = arith.cmpf ogt, %85, %86 : vector<2x40xf32>
    %88 = arith.extui %87 : vector<2x40xi1> to vector<2x40xi32>
    %89 = arith.sitofp %88 : vector<2x40xi32> to vector<2x40xf32>
    %90 = arith.index_cast %c6_i32 : i32 to index
    %c0_31 = arith.constant 0 : index
    %c0_32 = arith.constant 0 : index
    %91 = vector.load %arg4[%90, %c0_31, %c0_32] : memref<8x2x40xf32, #tpu.memory_space<vmem>>, vector<1x2x40xf32>
    %92 = vector.shape_cast %91 : vector<1x2x40xf32> to vector<2x40xf32>
    %93 = vector.shape_cast %89 : vector<2x40xf32> to vector<1x2x40xf32>
    tpu.vector_store %arg4[%90, %c0_31, %c0_32], %93 {strides = array<i32>} : memref<8x2x40xf32, #tpu.memory_space<vmem>>, vector<1x2x40xf32>,
    %cst_33 = arith.constant 9.990000e-01 : f32
    %94 = vector.broadcast %cst_33 : f32 to vector<2x40xf32>
    %95 = arith.mulf %89, %94 : vector<2x40xf32>
    %96 = arith.subf %85, %95 : vector<2x40xf32>
    %c7_i32 = arith.constant 7 : i32
    %97 = arith.addf %96, %11 : vector<2x40xf32>
    %cst_34 = arith.constant 9.990000e-01 : f32
    %98 = vector.broadcast %cst_34 : f32 to vector<2x40xf32>
    %99 = arith.cmpf ogt, %97, %98 : vector<2x40xf32>
    %100 = arith.extui %99 : vector<2x40xi1> to vector<2x40xi32>
    %101 = arith.sitofp %100 : vector<2x40xi32> to vector<2x40xf32>
    %102 = arith.index_cast %c7_i32 : i32 to index
    %c0_35 = arith.constant 0 : index
    %c0_36 = arith.constant 0 : index
    %103 = vector.load %arg4[%102, %c0_35, %c0_36] : memref<8x2x40xf32, #tpu.memory_space<vmem>>, vector<1x2x40xf32>
    %104 = vector.shape_cast %103 : vector<1x2x40xf32> to vector<2x40xf32>
    %105 = vector.shape_cast %101 : vector<2x40xf32> to vector<1x2x40xf32>
    tpu.vector_store %arg4[%102, %c0_35, %c0_36], %105 {strides = array<i32>} : memref<8x2x40xf32, #tpu.memory_space<vmem>>, vector<1x2x40xf32>,
    %cst_37 = arith.constant 9.990000e-01 : f32
    %106 = vector.broadcast %cst_37 : f32 to vector<2x40xf32>
    %107 = arith.mulf %101, %106 : vector<2x40xf32>
    %108 = arith.subf %97, %107 : vector<2x40xf32>
    %c8_i32 = arith.constant 8 : i32
    return
  }
  func.func @transform_0(%arg0: i32) -> (i32, i32) {
    %c0_i32 = arith.constant 0 : i32
    %c0_i32_0 = arith.constant 0 : i32
    return %arg0, %c0_i32 : i32, i32
  }
  func.func @transform_1(%arg0: i32) -> (i32, i32) {
    %c0_i32 = arith.constant 0 : i32
    %c0_i32_0 = arith.constant 0 : i32
    %c0_i32_1 = arith.constant 0 : i32
    return %c0_i32, %c0_i32_0 : i32, i32
  }
  func.func @transform_2(%arg0: i32) -> (i32, i32) {
    %c0_i32 = arith.constant 0 : i32
    %c0_i32_0 = arith.constant 0 : i32
    %c0_i32_1 = arith.constant 0 : i32
    return %c0_i32, %c0_i32_0 : i32, i32
  }
  func.func @transform_3(%arg0: i32) -> (i32, i32, i32) {
    %c0_i32 = arith.constant 0 : i32
    %c0_i32_0 = arith.constant 0 : i32
    %c0_i32_1 = arith.constant 0 : i32
    return %c0_i32, %arg0, %c0_i32_0 : i32, i32, i32
  }
}

</mosaic_0001>

<llo_original>
// kernel: tpu_custom_call.1
$region0: #{tpu_custom_call.1}
  #allocation0 [shape = 'u32[]', space=smem, size = 0x4, offset = 0x4, fixed_abs, tag = 'smem constant byte address 0x4 - core index']
  #allocation1 [shape = 'u32[144,128]{1,0:T(1,128)}', space=vmem, size = 0x12000, scoped, tag = 'internal scratch']
  %s0 = inlined_call_operand.hbm [shape: f32[2,40], index: 0, kind: input, shape index: {}]
  %s1 = inlined_call_operand.vmem [shape: f32[1,40], index: 1, kind: input, shape index: {}]
  %s2 = inlined_call_operand.vmem [shape: f32[1,40], index: 2, kind: input, shape index: {}]
  %s3 = inlined_call_operand.hbm [shape: f32[8,2,40], index: 3, kind: output, shape index: {}]
  %s4 = sld [smem:[#allocation0]]
  $region26: #{tpu_custom_call.1} parent=0
    _
  %s6 = ssub.s32 1, %s4
  %s7 = scalar_select 0, %s6, %s4
  $region1: #{tpu_custom_call.1} parent=0
    #allocation2 [shape = 'u8[1024]{0}', space=vmem, size = 0x400, scoped, tag = 'input window, operand 0, single buffered']
    #allocation3 [shape = 's32[1]{0}', space=sflag, size = 0x4, scoped, tag = 'scoped memory for tpu_custom_call.1']
    #allocation4 [shape = 's32[1]{0}', space=sflag, size = 0x4, scoped, tag = 'scoped memory for tpu_custom_call.1']
    #allocation5 [shape = 'u8[8192]{0}', space=vmem, size = 0x2000, scoped, tag = 'output window, operand 0, single buffered']
    %8 = vsyncpa [#allocation3], 0
    %9 = vsyncpa [#allocation4], 0
    // Predicated region
    $region2: #{tpu_custom_call.1} parent=1 // pred_check
      _
    $region3: #{tpu_custom_call.1} parent=1 // pred_check_branch
      %11 = sbr.rel (0) target = $region5
    $region4: #{tpu_custom_call.1} parent=1 // pred_region
      %s13 = ssub.s32 32, 32
      %14 = vsyncadd [#allocation3], %s13
      %s16 = sshll.u32 [#allocation2], 4
      %s17 = int_to_ptr.vmem [resolvable:$true] %s16
      %19 = dma.hbm_to_vmem [thread:$0]  %s0, 32, %s17, [#allocation3]
    $region5: #{tpu_custom_call.1} parent=1 // pred_fallthru
      _
    // Predicated region
    $region6: #{tpu_custom_call.1} parent=1 // pred_check
      _
    $region7: #{tpu_custom_call.1} parent=1 // pred_check_branch
      %21 = sbr.rel (0) target = $region9
    $region8: #{tpu_custom_call.1} parent=1 // pred_region
      _
    $region9: #{tpu_custom_call.1} parent=1 // pred_fallthru
      _
    // Predicated region
    $region10: #{tpu_custom_call.1} parent=1 // pred_check
      _
    $region11: #{tpu_custom_call.1} parent=1 // pred_check_branch
      %23 = sbr.rel (0) target = $region13
    $region12: #{tpu_custom_call.1} parent=1 // pred_region
      _
    $region13: #{tpu_custom_call.1} parent=1 // pred_fallthru
      _
    // Predicated region
    $region14: #{tpu_custom_call.1} parent=1 // pred_check
      _
    $region15: #{tpu_custom_call.1} parent=1 // pred_check_branch
      %25 = sbr.rel (0) target = $region17
    $region16: #{tpu_custom_call.1} parent=1 // pred_region
      %26 = dma.done [#allocation3], 32
    $region17: #{tpu_custom_call.1} parent=1 // pred_fallthru
      _
    %v27 = vld [vmem:[#allocation2] sm:$0x3]
    %v28 = vld [vmem:[%s1] sm:$0x1]
    %v29 = vld [vmem:[%s2] sm:$0x1]
    %v31 = vlaneseq
    %v32 = vshrl.u32 %v31, 7
    %v33 = vsub.s32 0, %v32
    %v34 = vrot.slane %v28, %v33
    %v36 = vsub.f32 %v27, %v34
    %v37 = vmul.f32 %v36, %v36
    %v38 = vmul.f32 %v37, -0.5
    %v39 = vmul.f32 %v29, %v29
    %v41 = vlaneseq
    %v42 = vshrl.u32 %v41, 7
    %v43 = vsub.s32 0, %v42
    %v44 = vrot.slane %v39, %v43
    %v46 = vrcp.pop %v44
    %v47 = vmul.f32 %v38, %v46
    %v48 = vmul.f32 %v47, 1.442695
    %v49 = vpow.pop %v48
    %v50 = vadd.f32 %v49, 0.0
    %vm51 = vcmp.gt.f32.partialorder %v50, 0.999
    %v52 = vsel %vm51, 1, 0
    %v53 = vcvt.s32.f32 %v52
    %vm54 = vcmask 320512
    %55 = vst.msk [vmem:[#allocation5] sm:$0x3] %vm54, %v53
    %v56 = vmul.f32 %v53, 0.999
    %v57 = vsub.f32 %v50, %v56
    %v58 = vadd.f32 %v57, %v49
    %vm59 = vcmp.gt.f32.partialorder %v58, 0.999
    %v60 = vsel %vm59, 1, 0
    %v61 = vcvt.s32.f32 %v60
    %s62 = scalar_lea.vmem [#allocation5], 2
    %63 = vst.msk [vmem:[%s62] sm:$0x3] %vm54, %v61
    %v64 = vmul.f32 %v61, 0.999
    %v65 = vsub.f32 %v58, %v64
    %v66 = vadd.f32 %v65, %v49
    %vm67 = vcmp.gt.f32.partialorder %v66, 0.999
    %v68 = vsel %vm67, 1, 0
    %v69 = vcvt.s32.f32 %v68
    %s70 = scalar_lea.vmem [#allocation5], 4
    %71 = vst.msk [vmem:[%s70] sm:$0x3] %vm54, %v69
    %v72 = vmul.f32 %v69, 0.999
    %v73 = vsub.f32 %v66, %v72
    %v74 = vadd.f32 %v73, %v49
    %vm75 = vcmp.gt.f32.partialorder %v74, 0.999
    %v76 = vsel %vm75, 1, 0
    %v77 = vcvt.s32.f32 %v76
    %s78 = scalar_lea.vmem [#allocation5], 6
    %79 = vst.msk [vmem:[%s78] sm:$0x3] %vm54, %v77
    %v80 = vmul.f32 %v77, 0.999
    %v81 = vsub.f32 %v74, %v80
    %v82 = vadd.f32 %v81, %v49
    %vm83 = vcmp.gt.f32.partialorder %v82, 0.999
    %v84 = vsel %vm83, 1, 0
    %v85 = vcvt.s32.f32 %v84
    %s86 = scalar_lea.vmem [#allocation5], 8
    %87 = vst.msk [vmem:[%s86] sm:$0x3] %vm54, %v85
    %v88 = vmul.f32 %v85, 0.999
    %v89 = vsub.f32 %v82, %v88
    %v90 = vadd.f32 %v89, %v49
    %vm91 = vcmp.gt.f32.partialorder %v90, 0.999
    %v92 = vsel %vm91, 1, 0
    %v93 = vcvt.s32.f32 %v92
    %s94 = scalar_lea.vmem [#allocation5], 10
    %95 = vst.msk [vmem:[%s94] sm:$0x3] %vm54, %v93
    %v96 = vmul.f32 %v93, 0.999
    %v97 = vsub.f32 %v90, %v96
    %v98 = vadd.f32 %v97, %v49
    %vm99 = vcmp.gt.f32.partialorder %v98, 0.999
    %v100 = vsel %vm99, 1, 0
    %v101 = vcvt.s32.f32 %v100
    %s102 = scalar_lea.vmem [#allocation5], 12
    %103 = vst.msk [vmem:[%s102] sm:$0x3] %vm54, %v101
    %v104 = vmul.f32 %v101, 0.999
    %v105 = vsub.f32 %v98, %v104
    %v106 = vadd.f32 %v105, %v49
    %vm107 = vcmp.gt.f32.partialorder %v106, 0.999
    %v108 = vsel %vm107, 1, 0
    %v109 = vcvt.s32.f32 %v108
    %s110 = scalar_lea.vmem [#allocation5], 14
    %111 = vst.msk [vmem:[%s110] sm:$0x3] %vm54, %v109
    // Predicated region
    $region18: #{tpu_custom_call.1} parent=1 // pred_check
      _
    $region19: #{tpu_custom_call.1} parent=1 // pred_check_branch
      %113 = sbr.rel (0) target = $region21
    $region20: #{tpu_custom_call.1} parent=1 // pred_region
      %s115 = ssub.s32 256, 256
      %116 = vsyncadd [#allocation4], %s115
      %s117 = sshll.u32 [#allocation5], 4
      %s118 = int_to_ptr.vmem [resolvable:$true] %s117
      %123 = dma.vmem_to_hbm [thread:$0]  %s118, 256, %s3, [#allocation4], 32, 32, 2
    $region21: #{tpu_custom_call.1} parent=1 // pred_fallthru
      _
    // Predicated region
    $region22: #{tpu_custom_call.1} parent=1 // pred_check
      _
    $region23: #{tpu_custom_call.1} parent=1 // pred_check_branch
      %125 = sbr.rel (0) target = $region25
    $region24: #{tpu_custom_call.1} parent=1 // pred_region
      %126 = dma.done [#allocation4], 256
    $region25: #{tpu_custom_call.1} parent=1 // pred_fallthru
      _
    %127 = vsyncpa [#allocation3], 1
    %128 = vsyncpa [#allocation4], 1

</llo_original>
